<compile_context>
chip_gen: v5e
topology: v5e:2x2
jax: 0.10.0
libtpu: 0.0.40
codegen_flags: <defaults>
</compile_context>

<pallas_src>
import jax
import jax.numpy as jnp
from jax.experimental import pallas as pl
from jax.experimental.pallas import tpu as pltpu


def h_swish_kernel(x_ref, o_ref):
    # x_ref / o_ref: (block_rows, lane) tile; lane is a multiple of 128 (or the
    # full slab width), so output stores are lane-dense / unmasked.
    x = x_ref[...]
    xf = x.astype(jnp.float32)
    # h_sigmoid(x) = relu6(x + 3) / 6  -> constant multiply, no vector divide.
    gate = jnp.clip(xf + 3.0, 0.0, 6.0) * (1.0 / 6.0)
    o_ref[...] = (xf * gate).astype(o_ref.dtype)


def _round_up(a, b):
    return (a + b - 1) // b * b


def h_swish(x, *, target_block_bytes=4 * 1024 * 1024, max_lane=4096):
    """h_swish(x) = x * relu6(x + 3) / 6, elementwise over any input shape."""
    orig_shape = x.shape
    n = x.size
    dtype = x.dtype
    itemsize = jnp.dtype(dtype).itemsize

    # --- layout: flatten to a lane-dense (rows, lane) slab, lane % 128 == 0 ---
    if n % 128 == 0:
        # Largest lane (multiple of 128, <= max_lane) that divides n exactly:
        # zero padding, zero output slicing -> no extra HBM traffic in wrapper.
        lane = 128
        hi = min(n, max_lane)
        for cand in range(hi - hi % 128, 127, -128):
            if n % cand == 0:
                lane = cand
                break
        n_work = n
        padded = False
    else:
        # Ragged flat size (rare for conv activations): minimal pad to a lane
        # multiple, sliced off afterwards.
        # TODO(synk): a tiny separate tail call would avoid even this pad/slice.
        lane = 128 if n < 512 else 512
        n_work = _round_up(n, lane)
        padded = True

    rows = n_work // lane

    xf = x.reshape(-1)
    if padded:
        xf = jnp.pad(xf, (0, n_work - n))
    x2 = xf.reshape(rows, lane)

    # --- block sizing (in bytes) ---
    sub = max(8, 32 // itemsize)            # sublane multiple for this dtype
    row_bytes = lane * itemsize
    target_rows = max(sub, (target_block_bytes // row_bytes) // sub * sub)

    if rows <= sub:
        block_rows = rows                   # tiny input: one full-extent block
    else:
        # Guarantee >= 2 grid steps: megacore split on v7x + real DMA overlap.
        half_rows = _round_up(pl.cdiv(rows, 2), sub)
        block_rows = max(sub, min(target_rows, half_rows))

    grid = (pl.cdiv(rows, block_rows),)     # partial last block handled by Pallas

    out2 = pl.pallas_call(
        h_swish_kernel,
        out_shape=jax.ShapeDtypeStruct((rows, lane), dtype),
        grid=grid,
        in_specs=[pl.BlockSpec((block_rows, lane), lambda i: (i, 0))],
        out_specs=pl.BlockSpec((block_rows, lane), lambda i: (i, 0)),
        compiler_params=pltpu.CompilerParams(
            dimension_semantics=("parallel",),        # megacore on v7x
            vmem_limit_bytes=32 * 1024 * 1024,        # ~50% headroom over 4x tile
        ),
        cost_estimate=pl.CostEstimate(
            flops=5 * n_work,                         # add, 2x clamp, 2x mul
            transcendentals=0,
            bytes_accessed=2 * n_work * itemsize,     # actual DMA traffic
        ),
    )(x2)

    if padded:
        return out2.reshape(-1)[:n].reshape(orig_shape)
    return out2.reshape(orig_shape)


def h_swish_ref(x):
    """Pure-JAX reference mirroring the PyTorch forward."""
    xf = x.astype(jnp.float32)
    return (xf * (jnp.clip(xf + 3.0, 0.0, 6.0) / 6.0)).astype(x.dtype)


if __name__ == "__main__":
    key = jax.random.PRNGKey(0)
    k1, k2, k3 = jax.random.split(key, 3)

    # Small NCHW shape consistent with the module's typical usage.
    x_small = jax.random.normal(k1, (2, 4, 16, 16), dtype=jnp.float32) * 3.0
    out_small = jax.block_until_ready(h_swish(x_small))
    assert out_small.shape == x_small.shape
    assert jnp.allclose(out_small, h_swish_ref(x_small), atol=1e-5, rtol=1e-5), \
        "mismatch (small)"

    # Medium shape exercising the multi-step grid with a partial last block
    # (no padding: 200704 elems -> 49 rows x 4096 lanes, block_rows=32, grid=(2,)).
    x_mid = jax.random.normal(k2, (2, 32, 56, 56), dtype=jnp.float32) * 3.0
    out_mid = jax.block_until_ready(h_swish(x_mid))
    assert out_mid.shape == x_mid.shape
    assert jnp.allclose(out_mid, h_swish_ref(x_mid), atol=1e-5, rtol=1e-5), \
        "mismatch (mid)"

    # Ragged flat size exercising the pad fallback path.
    x_rag = jax.random.normal(k3, (3, 5, 7), dtype=jnp.float32) * 3.0
    out_rag = jax.block_until_ready(h_swish(x_rag))
    assert out_rag.shape == x_rag.shape
    assert jnp.allclose(out_rag, h_swish_ref(x_rag), atol=1e-5, rtol=1e-5), \
        "mismatch (ragged)"

    # bf16 sanity check (internal f32 compute, cast back).
    x_bf16 = x_small.astype(jnp.bfloat16)
    out_bf16 = jax.block_until_ready(h_swish(x_bf16))
    assert out_bf16.dtype == jnp.bfloat16
    assert jnp.allclose(out_bf16.astype(jnp.float32),
                        h_swish_ref(x_bf16).astype(jnp.float32),
                        atol=2e-2, rtol=2e-2), "mismatch (bf16)"

    print("KERNEL_OK")
</pallas_src>

<mosaic_0001>
module attributes {stable_mosaic.version = 11 : i64} {
  func.func @h_swish_kernel(%arg0: i32, %arg1: memref<1x2048xf32, #tpu.memory_space<vmem>>, %arg2: memref<1x2048xf32, #tpu.memory_space<vmem>>) attributes {dimension_semantics = [#tpu.dimension_semantics<parallel>], iteration_bounds = array<i64: 1>, scalar_prefetch = 0 : i64, scratch_operands = 0 : i64, tpu.core_type = #tpu.core_type<tc>, window_params = [{transform_indices = @transform_0, window_bounds = array<i64: 1, 2048>}, {transform_indices = @transform_1, window_bounds = array<i64: 1, 2048>}]} {
    %c0 = arith.constant 0 : index
    %c0_0 = arith.constant 0 : index
    %0 = vector.load %arg1[%c0, %c0_0] : memref<1x2048xf32, #tpu.memory_space<vmem>>, vector<1x2048xf32>
    %cst = arith.constant 3.000000e+00 : f32
    %1 = vector.broadcast %cst : f32 to vector<1x2048xf32>
    %2 = arith.addf %0, %1 : vector<1x2048xf32>
    %cst_1 = arith.constant 0.000000e+00 : f32
    %cst_2 = arith.constant 6.000000e+00 : f32
    %3 = vector.broadcast %cst_1 : f32 to vector<1x2048xf32>
    %4 = arith.maximumf %3, %2 : vector<1x2048xf32>
    %5 = vector.broadcast %cst_2 : f32 to vector<1x2048xf32>
    %6 = arith.minimumf %5, %4 : vector<1x2048xf32>
    %cst_3 = arith.constant 0.166666672 : f32
    %7 = vector.broadcast %cst_3 : f32 to vector<1x2048xf32>
    %8 = arith.mulf %6, %7 : vector<1x2048xf32>
    %9 = arith.mulf %0, %8 : vector<1x2048xf32>
    %c0_4 = arith.constant 0 : index
    %c0_5 = arith.constant 0 : index
    %10 = vector.load %arg2[%c0_4, %c0_5] : memref<1x2048xf32, #tpu.memory_space<vmem>>, vector<1x2048xf32>
    tpu.vector_store %arg2[%c0_4, %c0_5], %9 {strides = array<i32>} : memref<1x2048xf32, #tpu.memory_space<vmem>>, vector<1x2048xf32>,
    return
  }
  func.func @transform_0(%arg0: i32) -> (i32, i32) {
    %c0_i32 = arith.constant 0 : i32
    %c0_i32_0 = arith.constant 0 : i32
    return %arg0, %c0_i32 : i32, i32
  }
  func.func @transform_1(%arg0: i32) -> (i32, i32) {
    %c0_i32 = arith.constant 0 : i32
    %c0_i32_0 = arith.constant 0 : i32
    return %arg0, %c0_i32 : i32, i32
  }
}

</mosaic_0001>

<llo_original>
// kernel: tpu_custom_call.1
$region0: #{tpu_custom_call.1}
  #allocation0 [shape = 'u32[]', space=smem, size = 0x4, offset = 0x4, fixed_abs, tag = 'smem constant byte address 0x4 - core index']
  #allocation1 [shape = 'u32[72,128]{1,0:T(1,128)}', space=vmem, size = 0x9000, scoped, tag = 'internal scratch']
  %s0 = inlined_call_operand.hbm [shape: f32[1,2048], index: 0, kind: input, shape index: {}]
  %s1 = inlined_call_operand.hbm [shape: f32[1,2048], index: 1, kind: output, shape index: {}]
  %s2 = sld [smem:[#allocation0]]
  $region18: #{tpu_custom_call.1} parent=0
    _
  %s4 = ssub.s32 1, %s2
  %s5 = scalar_select 0, %s4, %s2
  $region1: #{tpu_custom_call.1} parent=0
    #allocation2 [shape = 'u8[8192]{0}', space=vmem, size = 0x2000, scoped, tag = 'input window, operand 0, single buffered']
    #allocation3 [shape = 's32[1]{0}', space=sflag, size = 0x4, scoped, tag = 'scoped memory for tpu_custom_call.1']
    #allocation4 [shape = 's32[1]{0}', space=sflag, size = 0x4, scoped, tag = 'scoped memory for tpu_custom_call.1']
    #allocation5 [shape = 'u8[8192]{0}', space=vmem, size = 0x2000, scoped, tag = 'output window, operand 0, single buffered']
    %6 = vsyncpa [#allocation3], 0
    %7 = vsyncpa [#allocation4], 0
    // Predicated region
    $region2: #{tpu_custom_call.1} parent=1 // pred_check
      _
    $region3: #{tpu_custom_call.1} parent=1 // pred_check_branch
      %9 = sbr.rel (0) target = $region5
    $region4: #{tpu_custom_call.1} parent=1 // pred_region
      %11 = vsyncadd [#allocation3], 0
      %s13 = sshll.u32 %s0, 4
      %s14 = int_to_ptr.hbm [resolvable:$true] %s13
      %s15 = sshll.u32 [#allocation2], 4
      %s16 = int_to_ptr.vmem [resolvable:$true] %s15
      %18 = dma.hbm_to_vmem [thread:$0]  %s14, 256, %s16, [#allocation3]
    $region5: #{tpu_custom_call.1} parent=1 // pred_fallthru
      _
    // Predicated region
    $region6: #{tpu_custom_call.1} parent=1 // pred_check
      _
    $region7: #{tpu_custom_call.1} parent=1 // pred_check_branch
      %20 = sbr.rel (0) target = $region9
    $region8: #{tpu_custom_call.1} parent=1 // pred_region
      %22 = dma.done [#allocation3], 256
    $region9: #{tpu_custom_call.1} parent=1 // pred_fallthru
      _
    %v23 = vld [vmem:[#allocation2] sm:$0xff]
    %v24 = vld [vmem:[#allocation2 + $0x8] sm:$0xff]
    %v25 = vadd.f32 %v23, 3.0
    %v26 = vadd.f32 %v24, 3.0
    %v27 = vmax.f32 %v25, 0.0
    %v28 = vmax.f32 %v26, 0.0
    %v29 = vmin.f32 %v27, 6.0
    %v30 = vmin.f32 %v28, 6.0
    %v31 = vmul.f32 %v29, 0.16666667
    %v32 = vmul.f32 %v30, 0.16666667
    %v33 = vmul.f32 %v23, %v31
    %v34 = vmul.f32 %v24, %v32
    %35 = vst [vmem:[#allocation5] sm:$0xff] %v33
    %36 = vst [vmem:[#allocation5 + $0x8] sm:$0xff] %v34
    // Predicated region
    $region10: #{tpu_custom_call.1} parent=1 // pred_check
      _
    $region11: #{tpu_custom_call.1} parent=1 // pred_check_branch
      %38 = sbr.rel (0) target = $region13
    $region12: #{tpu_custom_call.1} parent=1 // pred_region
      %40 = vsyncadd [#allocation4], 0
      %s42 = sshll.u32 [#allocation5], 4
      %s43 = int_to_ptr.vmem [resolvable:$true] %s42
      %s44 = sshll.u32 %s1, 4
      %s45 = int_to_ptr.hbm [resolvable:$true] %s44
      %47 = dma.vmem_to_hbm [thread:$0]  %s43, 256, %s45, [#allocation4]
    $region13: #{tpu_custom_call.1} parent=1 // pred_fallthru
      _
    // Predicated region
    $region14: #{tpu_custom_call.1} parent=1 // pred_check
      _
    $region15: #{tpu_custom_call.1} parent=1 // pred_check_branch
      %49 = sbr.rel (0) target = $region17
    $region16: #{tpu_custom_call.1} parent=1 // pred_region
      %51 = dma.done [#allocation4], 256
    $region17: #{tpu_custom_call.1} parent=1 // pred_fallthru
      _
    %52 = vsyncpa [#allocation3], 1
    %53 = vsyncpa [#allocation4], 1

</llo_original>
